<compile_context>
chip_gen: v5e
topology: v5e:2x2
jax: 0.10.0
libtpu: 0.0.40
codegen_flags: <defaults>
</compile_context>

<pallas_src>
import functools

import jax
import jax.numpy as jnp
from jax import lax
from jax.experimental import pallas as pl
from jax.experimental.pallas import tpu as pltpu


def _dot(a, b, *, contract_a=1, contract_b=0):
    """2-D MXU matmul with explicit contracting dims (no materialized .T)."""
    return lax.dot_general(
        a, b,
        dimension_numbers=(((contract_a,), (contract_b,)), ((), ())),
        preferred_element_type=jnp.float32)


def _coattention_kernel(v_ref, q_ref, wb_ref, wv_ref, wq_ref, whv_ref, whq_ref,
                        v_out_ref, q_out_ref, *, matmul_dtype):
    B, D, M = v_ref.shape
    L = q_ref.shape[1]
    md = matmul_dtype

    # Weights loaded once for the whole batch.
    Wb = wb_ref[...].astype(md)      # (D, D)
    Wv = wv_ref[...].astype(md)      # (K, D)
    Wq = wq_ref[...].astype(md)      # (K, D)
    whv = whv_ref[...].astype(md)    # (1, K)  lane-major
    whq = whq_ref[...].astype(md)    # (1, K)

    # Static unroll over the (tiny) batch inside one kernel invocation.
    for b in range(B):
        Vb = v_ref[b].astype(md)     # (D, M)
        Qb = q_ref[b].astype(md)     # (L, D)

        # C = Q @ (W_b @ V); pick the cheaper association at trace time.
        if L <= D:
            QWb = _dot(Qb, Wb)                                   # (L, D)
            C = _dot(QWb.astype(md), Vb)                         # (L, M)
        else:
            WbV = _dot(Wb, Vb)                                   # (D, M)
            C = _dot(Qb, WbV.astype(md))                         # (L, M)

        WvV = _dot(Wv, Vb)                                       # (K, M)
        # W_q @ Q^T without a transpose: contract D with D.
        WqQt = _dot(Wq, Qb, contract_a=1, contract_b=1)          # (K, L)

        # Activation path stays in f32 (v5e has no bf16 VPU/EUP).
        Hv = jnp.tanh(WvV + _dot(WqQt.astype(md), C.astype(md)))              # (K, M)
        # (W_v V) @ C^T without a transpose: contract M with M.
        Hq = jnp.tanh(WqQt + _dot(WvV.astype(md), C.astype(md),
                                  contract_a=1, contract_b=1))                # (K, L)

        # w_h^T @ H as (1,K)@(K,*) MXU matmuls (frees VPU/XLU slots).
        sv = _dot(whv, Hv.astype(md))                            # (1, M)
        sq = _dot(whq, Hq.astype(md))                            # (1, L)

        # Numerically stable softmax; EUP approx reciprocal for the denominator.
        ev = jnp.exp(sv - jnp.max(sv, axis=1, keepdims=True))
        av = ev * pl.reciprocal(jnp.sum(ev, axis=1, keepdims=True), approx=True)
        eq = jnp.exp(sq - jnp.max(sq, axis=1, keepdims=True))
        aq = eq * pl.reciprocal(jnp.sum(eq, axis=1, keepdims=True), approx=True)

        # Pooled vectors: a_v @ V^T (contract M with M), a_q @ Q.
        v_vec = _dot(av.astype(md), Vb, contract_a=1, contract_b=1)   # (1, D)
        q_vec = _dot(aq.astype(md), Qb)                               # (1, D)

        v_out_ref[b] = v_vec.astype(v_out_ref.dtype)
        q_out_ref[b] = q_vec.astype(q_out_ref.dtype)


def coattention_forward(V, Q, W_b, W_v, W_q, w_hv, w_hq, *,
                        matmul_dtype=jnp.float32):
    """Matches CoattentionNet.forward: returns v (B, M, D), q (B, L, D)."""
    B, D, M = V.shape
    _, L, _ = Q.shape
    K = W_v.shape[0]

    # Lane-major (1, K) layout for the attention projection vectors.
    whv_row = w_hv.reshape(1, K)
    whq_row = w_hq.reshape(1, K)

    kernel = functools.partial(_coattention_kernel, matmul_dtype=matmul_dtype)

    grid_spec = pltpu.PrefetchScalarGridSpec(
        num_scalar_prefetch=0,
        grid=(1,),                       # whole batch in one step
        in_specs=[
            pl.BlockSpec((B, D, M), lambda i: (0, 0, 0)),
            pl.BlockSpec((B, L, D), lambda i: (0, 0, 0)),
            pl.BlockSpec((D, D), lambda i: (0, 0)),
            pl.BlockSpec((K, D), lambda i: (0, 0)),
            pl.BlockSpec((K, D), lambda i: (0, 0)),
            pl.BlockSpec((1, K), lambda i: (0, 0)),
            pl.BlockSpec((1, K), lambda i: (0, 0)),
        ],
        out_specs=[
            pl.BlockSpec((B, 1, D), lambda i: (0, 0, 0)),
            pl.BlockSpec((B, 1, D), lambda i: (0, 0, 0)),
        ],
    )

    v_pool, q_pool = pl.pallas_call(
        kernel,
        out_shape=(
            jax.ShapeDtypeStruct((B, 1, D), jnp.float32),
            jax.ShapeDtypeStruct((B, 1, D), jnp.float32),
        ),
        grid_spec=grid_spec,
        compiler_params=pltpu.CompilerParams(
            dimension_semantics=("arbitrary",)),
    )(V, Q, W_b, W_v, W_q, whv_row, whq_row)

    # torch.stack([a]*M).squeeze() trick: every row along M / L is the same
    # pooled vector; broadcast outside the kernel (fuses into consumers).
    v = jnp.broadcast_to(v_pool, (B, M, D))
    q = jnp.broadcast_to(q_pool, (B, L, D))
    return v, q


def coattention_ref(V, Q, W_b, W_v, W_q, w_hv, w_hq):
    """Plain-JAX reference mirroring the PyTorch forward."""
    C = jnp.einsum("bld,de,bem->blm", Q, W_b, V)                 # (B, L, M)
    WvV = jnp.einsum("kd,bdm->bkm", W_v, V)                      # (B, K, M)
    WqQt = jnp.einsum("kd,bld->bkl", W_q, Q)                     # (B, K, L)
    Hv = jnp.tanh(WvV + jnp.einsum("bkl,blm->bkm", WqQt, C))     # (B, K, M)
    Hq = jnp.tanh(WqQt + jnp.einsum("bkm,blm->bkl", WvV, C))     # (B, K, L)
    av = jax.nn.softmax(jnp.einsum("ko,bkm->bom", w_hv, Hv), axis=2)  # (B,1,M)
    aq = jax.nn.softmax(jnp.einsum("ko,bkl->bol", w_hq, Hq), axis=2)  # (B,1,L)
    M = V.shape[2]
    L = Q.shape[1]
    v_vec = jnp.einsum("bom,bdm->bod", av, V)                    # (B, 1, D)
    q_vec = jnp.einsum("bol,bld->bod", aq, Q)                    # (B, 1, D)
    v = jnp.broadcast_to(v_vec, (V.shape[0], M, V.shape[1]))
    q = jnp.broadcast_to(q_vec, (Q.shape[0], L, Q.shape[2]))
    return v, q


if __name__ == "__main__":
    # Small shapes consistent with the module: B=2, embed_dim=32, k=16, M=16, L=8.
    B, D, K, M, L = 2, 32, 16, 16, 8

    key = jax.random.PRNGKey(0)
    k1, k2, k3, k4, k5, k6, k7 = jax.random.split(key, 7)

    # Deterministic "randn"-style parameter init (matches __init__ shapes).
    W_b = jax.random.normal(k1, (D, D), jnp.float32)
    W_v = jax.random.normal(k2, (K, D), jnp.float32)
    W_q = jax.random.normal(k3, (K, D), jnp.float32)
    w_hv = jax.random.normal(k4, (K, 1), jnp.float32)
    w_hq = jax.random.normal(k5, (K, 1), jnp.float32)

    # Inputs (scaled down so tanh / softmax are not fully saturated).
    V = jax.random.normal(k6, (B, D, M), jnp.float32) * 0.1
    Q = jax.random.normal(k7, (B, L, D), jnp.float32) * 0.1

    # f32 matmul operands for the tight correctness check; use
    # matmul_dtype=jnp.bfloat16 for production-sized shapes on v6e/v7x.
    v_out, q_out = coattention_forward(V, Q, W_b, W_v, W_q, w_hv, w_hq)
    jax.block_until_ready((v_out, q_out))

    v_ref, q_ref = coattention_ref(V, Q, W_b, W_v, W_q, w_hv, w_hq)
    assert jnp.allclose(v_out, v_ref, atol=2e-3, rtol=2e-3), "v mismatch"
    assert jnp.allclose(q_out, q_ref, atol=2e-3, rtol=2e-3), "q mismatch"

    print("KERNEL_OK")
</pallas_src>

<mosaic_0001>
module attributes {stable_mosaic.version = 11 : i64} {
  func.func @_coattention_kernel(%arg0: i32, %arg1: memref<2x32x16xf32, #tpu.memory_space<vmem>>, %arg2: memref<2x8x32xf32, #tpu.memory_space<vmem>>, %arg3: memref<32x32xf32, #tpu.memory_space<vmem>>, %arg4: memref<16x32xf32, #tpu.memory_space<vmem>>, %arg5: memref<16x32xf32, #tpu.memory_space<vmem>>, %arg6: memref<1x16xf32, #tpu.memory_space<vmem>>, %arg7: memref<1x16xf32, #tpu.memory_space<vmem>>, %arg8: memref<2x1x32xf32, #tpu.memory_space<vmem>>, %arg9: memref<2x1x32xf32, #tpu.memory_space<vmem>>) attributes {dimension_semantics = [#tpu.dimension_semantics<arbitrary>], iteration_bounds = array<i64: 1>, scalar_prefetch = 0 : i64, scratch_operands = 0 : i64, tpu.core_type = #tpu.core_type<tc>, window_params = [{pipeline_mode = #tpu.pipeline_mode<synchronous>, transform_indices = @transform_0, window_bounds = array<i64: 2, 32, 16>}, {pipeline_mode = #tpu.pipeline_mode<synchronous>, transform_indices = @transform_1, window_bounds = array<i64: 2, 8, 32>}, {pipeline_mode = #tpu.pipeline_mode<synchronous>, transform_indices = @transform_2, window_bounds = array<i64: 32, 32>}, {pipeline_mode = #tpu.pipeline_mode<synchronous>, transform_indices = @transform_3, window_bounds = array<i64: 16, 32>}, {pipeline_mode = #tpu.pipeline_mode<synchronous>, transform_indices = @transform_4, window_bounds = array<i64: 16, 32>}, {pipeline_mode = #tpu.pipeline_mode<synchronous>, transform_indices = @transform_5, window_bounds = array<i64: 1, 16>}, {pipeline_mode = #tpu.pipeline_mode<synchronous>, transform_indices = @transform_6, window_bounds = array<i64: 1, 16>}, {pipeline_mode = #tpu.pipeline_mode<synchronous>, transform_indices = @transform_7, window_bounds = array<i64: 2, 1, 32>}, {pipeline_mode = #tpu.pipeline_mode<synchronous>, transform_indices = @transform_8, window_bounds = array<i64: 2, 1, 32>}]} {
    %c0 = arith.constant 0 : index
    %c0_0 = arith.constant 0 : index
    %0 = vector.load %arg3[%c0, %c0_0] : memref<32x32xf32, #tpu.memory_space<vmem>>, vector<32x32xf32>
    %c0_1 = arith.constant 0 : index
    %c0_2 = arith.constant 0 : index
    %1 = vector.load %arg4[%c0_1, %c0_2] : memref<16x32xf32, #tpu.memory_space<vmem>>, vector<16x32xf32>
    %c0_3 = arith.constant 0 : index
    %c0_4 = arith.constant 0 : index
    %2 = vector.load %arg5[%c0_3, %c0_4] : memref<16x32xf32, #tpu.memory_space<vmem>>, vector<16x32xf32>
    %c0_5 = arith.constant 0 : index
    %c0_6 = arith.constant 0 : index
    %3 = vector.load %arg6[%c0_5, %c0_6] : memref<1x16xf32, #tpu.memory_space<vmem>>, vector<1x16xf32>
    %c0_7 = arith.constant 0 : index
    %c0_8 = arith.constant 0 : index
    %4 = vector.load %arg7[%c0_7, %c0_8] : memref<1x16xf32, #tpu.memory_space<vmem>>, vector<1x16xf32>
    %c0_9 = arith.constant 0 : index
    %c0_10 = arith.constant 0 : index
    %c0_11 = arith.constant 0 : index
    %5 = vector.load %arg1[%c0_9, %c0_10, %c0_11] : memref<2x32x16xf32, #tpu.memory_space<vmem>>, vector<1x32x16xf32>
    %6 = vector.shape_cast %5 : vector<1x32x16xf32> to vector<32x16xf32>
    %c0_12 = arith.constant 0 : index
    %c0_13 = arith.constant 0 : index
    %c0_14 = arith.constant 0 : index
    %7 = vector.load %arg2[%c0_12, %c0_13, %c0_14] : memref<2x8x32xf32, #tpu.memory_space<vmem>>, vector<1x8x32xf32>
    %8 = vector.shape_cast %7 : vector<1x8x32xf32> to vector<8x32xf32>
    %cst = arith.constant dense<0.000000e+00> : vector<8x32xf32>
    %9 = tpu.matmul %8, %0, %cst {dimension_numbers = #tpu.dot_dimension_numbers<[1], [0], [0], [1], [0, 0, 1, 1], [], []>} : vector<8x32xf32>, vector<32x32xf32>, vector<8x32xf32> -> vector<8x32xf32>
    %cst_15 = arith.constant dense<0.000000e+00> : vector<8x16xf32>
    %10 = tpu.matmul %9, %6, %cst_15 {dimension_numbers = #tpu.dot_dimension_numbers<[1], [0], [0], [1], [0, 0, 1, 1], [], []>} : vector<8x32xf32>, vector<32x16xf32>, vector<8x16xf32> -> vector<8x16xf32>
    %cst_16 = arith.constant dense<0.000000e+00> : vector<16x16xf32>
    %11 = tpu.matmul %1, %6, %cst_16 {dimension_numbers = #tpu.dot_dimension_numbers<[1], [0], [0], [1], [0, 0, 1, 1], [], []>} : vector<16x32xf32>, vector<32x16xf32>, vector<16x16xf32> -> vector<16x16xf32>
    %cst_17 = arith.constant dense<0.000000e+00> : vector<16x8xf32>
    %12 = tpu.matmul %2, %8, %cst_17 {dimension_numbers = #tpu.dot_dimension_numbers<[1], [1], [0], [0], [0, 0, 1, 0], [], []>} : vector<16x32xf32>, vector<8x32xf32>, vector<16x8xf32> -> vector<16x8xf32>
    %cst_18 = arith.constant dense<0.000000e+00> : vector<16x16xf32>
    %13 = tpu.matmul %12, %10, %cst_18 {dimension_numbers = #tpu.dot_dimension_numbers<[1], [0], [0], [1], [0, 0, 1, 1], [], []>} : vector<16x8xf32>, vector<8x16xf32>, vector<16x16xf32> -> vector<16x16xf32>
    %14 = arith.addf %11, %13 : vector<16x16xf32>
    %15 = math.tanh %14 : vector<16x16xf32>
    %cst_19 = arith.constant dense<0.000000e+00> : vector<16x8xf32>
    %16 = tpu.matmul %11, %10, %cst_19 {dimension_numbers = #tpu.dot_dimension_numbers<[1], [1], [0], [0], [0, 0, 1, 0], [], []>} : vector<16x16xf32>, vector<8x16xf32>, vector<16x8xf32> -> vector<16x8xf32>
    %17 = arith.addf %12, %16 : vector<16x8xf32>
    %18 = math.tanh %17 : vector<16x8xf32>
    %cst_20 = arith.constant dense<0.000000e+00> : vector<1x16xf32>
    %19 = tpu.matmul %3, %15, %cst_20 {dimension_numbers = #tpu.dot_dimension_numbers<[1], [0], [0], [1], [0, 0, 1, 1], [], []>} : vector<1x16xf32>, vector<16x16xf32>, vector<1x16xf32> -> vector<1x16xf32>
    %cst_21 = arith.constant dense<0.000000e+00> : vector<1x8xf32>
    %20 = tpu.matmul %4, %18, %cst_21 {dimension_numbers = #tpu.dot_dimension_numbers<[1], [0], [0], [1], [0, 0, 1, 1], [], []>} : vector<1x16xf32>, vector<16x8xf32>, vector<1x8xf32> -> vector<1x8xf32>
    %cst_22 = arith.constant dense<0xFF800000> : vector<1xf32>
    %21 = vector.multi_reduction <maximumf>, %19, %cst_22 [1] : vector<1x16xf32> to vector<1xf32>
    %22 = vector.shape_cast %21 : vector<1xf32> to vector<1x1xf32>
    %23 = vector.broadcast %22 : vector<1x1xf32> to vector<1x16xf32>
    %24 = arith.subf %19, %23 : vector<1x16xf32>
    %25 = math.exp %24 : vector<1x16xf32>
    %cst_23 = arith.constant dense<0.000000e+00> : vector<1xf32>
    %26 = vector.multi_reduction <add>, %25, %cst_23 [1] : vector<1x16xf32> to vector<1xf32>
    %27 = vector.shape_cast %26 : vector<1xf32> to vector<1x1xf32>
    %28 = tpu.reciprocal %27 {approx = true} : vector<1x1xf32> -> vector<1x1xf32>
    %29 = vector.broadcast %28 : vector<1x1xf32> to vector<1x16xf32>
    %30 = arith.mulf %25, %29 : vector<1x16xf32>
    %cst_24 = arith.constant dense<0xFF800000> : vector<1xf32>
    %31 = vector.multi_reduction <maximumf>, %20, %cst_24 [1] : vector<1x8xf32> to vector<1xf32>
    %32 = vector.shape_cast %31 : vector<1xf32> to vector<1x1xf32>
    %33 = vector.broadcast %32 : vector<1x1xf32> to vector<1x8xf32>
    %34 = arith.subf %20, %33 : vector<1x8xf32>
    %35 = math.exp %34 : vector<1x8xf32>
    %cst_25 = arith.constant dense<0.000000e+00> : vector<1xf32>
    %36 = vector.multi_reduction <add>, %35, %cst_25 [1] : vector<1x8xf32> to vector<1xf32>
    %37 = vector.shape_cast %36 : vector<1xf32> to vector<1x1xf32>
    %38 = tpu.reciprocal %37 {approx = true} : vector<1x1xf32> -> vector<1x1xf32>
    %39 = vector.broadcast %38 : vector<1x1xf32> to vector<1x8xf32>
    %40 = arith.mulf %35, %39 : vector<1x8xf32>
    %cst_26 = arith.constant dense<0.000000e+00> : vector<1x32xf32>
    %41 = tpu.matmul %30, %6, %cst_26 {dimension_numbers = #tpu.dot_dimension_numbers<[1], [1], [0], [0], [0, 0, 1, 0], [], []>} : vector<1x16xf32>, vector<32x16xf32>, vector<1x32xf32> -> vector<1x32xf32>
    %cst_27 = arith.constant dense<0.000000e+00> : vector<1x32xf32>
    %42 = tpu.matmul %40, %8, %cst_27 {dimension_numbers = #tpu.dot_dimension_numbers<[1], [0], [0], [1], [0, 0, 1, 1], [], []>} : vector<1x8xf32>, vector<8x32xf32>, vector<1x32xf32> -> vector<1x32xf32>
    %c0_28 = arith.constant 0 : index
    %c0_29 = arith.constant 0 : index
    %c0_30 = arith.constant 0 : index
    %43 = vector.load %arg8[%c0_28, %c0_29, %c0_30] : memref<2x1x32xf32, #tpu.memory_space<vmem>>, vector<1x1x32xf32>
    %44 = vector.shape_cast %43 : vector<1x1x32xf32> to vector<1x32xf32>
    %45 = vector.shape_cast %41 : vector<1x32xf32> to vector<1x1x32xf32>
    tpu.vector_store %arg8[%c0_28, %c0_29, %c0_30], %45 {strides = array<i32>} : memref<2x1x32xf32, #tpu.memory_space<vmem>>, vector<1x1x32xf32>,
    %c0_31 = arith.constant 0 : index
    %c0_32 = arith.constant 0 : index
    %c0_33 = arith.constant 0 : index
    %46 = vector.load %arg9[%c0_31, %c0_32, %c0_33] : memref<2x1x32xf32, #tpu.memory_space<vmem>>, vector<1x1x32xf32>
    %47 = vector.shape_cast %46 : vector<1x1x32xf32> to vector<1x32xf32>
    %48 = vector.shape_cast %42 : vector<1x32xf32> to vector<1x1x32xf32>
    tpu.vector_store %arg9[%c0_31, %c0_32, %c0_33], %48 {strides = array<i32>} : memref<2x1x32xf32, #tpu.memory_space<vmem>>, vector<1x1x32xf32>,
    %c1 = arith.constant 1 : index
    %c0_34 = arith.constant 0 : index
    %c0_35 = arith.constant 0 : index
    %49 = vector.load %arg1[%c1, %c0_34, %c0_35] : memref<2x32x16xf32, #tpu.memory_space<vmem>>, vector<1x32x16xf32>
    %50 = vector.shape_cast %49 : vector<1x32x16xf32> to vector<32x16xf32>
    %c1_36 = arith.constant 1 : index
    %c0_37 = arith.constant 0 : index
    %c0_38 = arith.constant 0 : index
    %51 = vector.load %arg2[%c1_36, %c0_37, %c0_38] : memref<2x8x32xf32, #tpu.memory_space<vmem>>, vector<1x8x32xf32>
    %52 = vector.shape_cast %51 : vector<1x8x32xf32> to vector<8x32xf32>
    %cst_39 = arith.constant dense<0.000000e+00> : vector<8x32xf32>
    %53 = tpu.matmul %52, %0, %cst_39 {dimension_numbers = #tpu.dot_dimension_numbers<[1], [0], [0], [1], [0, 0, 1, 1], [], []>} : vector<8x32xf32>, vector<32x32xf32>, vector<8x32xf32> -> vector<8x32xf32>
    %cst_40 = arith.constant dense<0.000000e+00> : vector<8x16xf32>
    %54 = tpu.matmul %53, %50, %cst_40 {dimension_numbers = #tpu.dot_dimension_numbers<[1], [0], [0], [1], [0, 0, 1, 1], [], []>} : vector<8x32xf32>, vector<32x16xf32>, vector<8x16xf32> -> vector<8x16xf32>
    %cst_41 = arith.constant dense<0.000000e+00> : vector<16x16xf32>
    %55 = tpu.matmul %1, %50, %cst_41 {dimension_numbers = #tpu.dot_dimension_numbers<[1], [0], [0], [1], [0, 0, 1, 1], [], []>} : vector<16x32xf32>, vector<32x16xf32>, vector<16x16xf32> -> vector<16x16xf32>
    %cst_42 = arith.constant dense<0.000000e+00> : vector<16x8xf32>
    %56 = tpu.matmul %2, %52, %cst_42 {dimension_numbers = #tpu.dot_dimension_numbers<[1], [1], [0], [0], [0, 0, 1, 0], [], []>} : vector<16x32xf32>, vector<8x32xf32>, vector<16x8xf32> -> vector<16x8xf32>
    %cst_43 = arith.constant dense<0.000000e+00> : vector<16x16xf32>
    %57 = tpu.matmul %56, %54, %cst_43 {dimension_numbers = #tpu.dot_dimension_numbers<[1], [0], [0], [1], [0, 0, 1, 1], [], []>} : vector<16x8xf32>, vector<8x16xf32>, vector<16x16xf32> -> vector<16x16xf32>
    %58 = arith.addf %55, %57 : vector<16x16xf32>
    %59 = math.tanh %58 : vector<16x16xf32>
    %cst_44 = arith.constant dense<0.000000e+00> : vector<16x8xf32>
    %60 = tpu.matmul %55, %54, %cst_44 {dimension_numbers = #tpu.dot_dimension_numbers<[1], [1], [0], [0], [0, 0, 1, 0], [], []>} : vector<16x16xf32>, vector<8x16xf32>, vector<16x8xf32> -> vector<16x8xf32>
    %61 = arith.addf %56, %60 : vector<16x8xf32>
    %62 = math.tanh %61 : vector<16x8xf32>
    %cst_45 = arith.constant dense<0.000000e+00> : vector<1x16xf32>
    %63 = tpu.matmul %3, %59, %cst_45 {dimension_numbers = #tpu.dot_dimension_numbers<[1], [0], [0], [1], [0, 0, 1, 1], [], []>} : vector<1x16xf32>, vector<16x16xf32>, vector<1x16xf32> -> vector<1x16xf32>
    %cst_46 = arith.constant dense<0.000000e+00> : vector<1x8xf32>
    %64 = tpu.matmul %4, %62, %cst_46 {dimension_numbers = #tpu.dot_dimension_numbers<[1], [0], [0], [1], [0, 0, 1, 1], [], []>} : vector<1x16xf32>, vector<16x8xf32>, vector<1x8xf32> -> vector<1x8xf32>
    %cst_47 = arith.constant dense<0xFF800000> : vector<1xf32>
    %65 = vector.multi_reduction <maximumf>, %63, %cst_47 [1] : vector<1x16xf32> to vector<1xf32>
    %66 = vector.shape_cast %65 : vector<1xf32> to vector<1x1xf32>
    %67 = vector.broadcast %66 : vector<1x1xf32> to vector<1x16xf32>
    %68 = arith.subf %63, %67 : vector<1x16xf32>
    %69 = math.exp %68 : vector<1x16xf32>
    %cst_48 = arith.constant dense<0.000000e+00> : vector<1xf32>
    %70 = vector.multi_reduction <add>, %69, %cst_48 [1] : vector<1x16xf32> to vector<1xf32>
    %71 = vector.shape_cast %70 : vector<1xf32> to vector<1x1xf32>
    %72 = tpu.reciprocal %71 {approx = true} : vector<1x1xf32> -> vector<1x1xf32>
    %73 = vector.broadcast %72 : vector<1x1xf32> to vector<1x16xf32>
    %74 = arith.mulf %69, %73 : vector<1x16xf32>
    %cst_49 = arith.constant dense<0xFF800000> : vector<1xf32>
    %75 = vector.multi_reduction <maximumf>, %64, %cst_49 [1] : vector<1x8xf32> to vector<1xf32>
    %76 = vector.shape_cast %75 : vector<1xf32> to vector<1x1xf32>
    %77 = vector.broadcast %76 : vector<1x1xf32> to vector<1x8xf32>
    %78 = arith.subf %64, %77 : vector<1x8xf32>
    %79 = math.exp %78 : vector<1x8xf32>
    %cst_50 = arith.constant dense<0.000000e+00> : vector<1xf32>
    %80 = vector.multi_reduction <add>, %79, %cst_50 [1] : vector<1x8xf32> to vector<1xf32>
    %81 = vector.shape_cast %80 : vector<1xf32> to vector<1x1xf32>
    %82 = tpu.reciprocal %81 {approx = true} : vector<1x1xf32> -> vector<1x1xf32>
    %83 = vector.broadcast %82 : vector<1x1xf32> to vector<1x8xf32>
    %84 = arith.mulf %79, %83 : vector<1x8xf32>
    %cst_51 = arith.constant dense<0.000000e+00> : vector<1x32xf32>
    %85 = tpu.matmul %74, %50, %cst_51 {dimension_numbers = #tpu.dot_dimension_numbers<[1], [1], [0], [0], [0, 0, 1, 0], [], []>} : vector<1x16xf32>, vector<32x16xf32>, vector<1x32xf32> -> vector<1x32xf32>
    %cst_52 = arith.constant dense<0.000000e+00> : vector<1x32xf32>
    %86 = tpu.matmul %84, %52, %cst_52 {dimension_numbers = #tpu.dot_dimension_numbers<[1], [0], [0], [1], [0, 0, 1, 1], [], []>} : vector<1x8xf32>, vector<8x32xf32>, vector<1x32xf32> -> vector<1x32xf32>
    %c1_53 = arith.constant 1 : index
    %c0_54 = arith.constant 0 : index
    %c0_55 = arith.constant 0 : index
    %87 = vector.load %arg8[%c1_53, %c0_54, %c0_55] : memref<2x1x32xf32, #tpu.memory_space<vmem>>, vector<1x1x32xf32>
    %88 = vector.shape_cast %87 : vector<1x1x32xf32> to vector<1x32xf32>
    %89 = vector.shape_cast %85 : vector<1x32xf32> to vector<1x1x32xf32>
    tpu.vector_store %arg8[%c1_53, %c0_54, %c0_55], %89 {strides = array<i32>} : memref<2x1x32xf32, #tpu.memory_space<vmem>>, vector<1x1x32xf32>,
    %c1_56 = arith.constant 1 : index
    %c0_57 = arith.constant 0 : index
    %c0_58 = arith.constant 0 : index
    %90 = vector.load %arg9[%c1_56, %c0_57, %c0_58] : memref<2x1x32xf32, #tpu.memory_space<vmem>>, vector<1x1x32xf32>
    %91 = vector.shape_cast %90 : vector<1x1x32xf32> to vector<1x32xf32>
    %92 = vector.shape_cast %86 : vector<1x32xf32> to vector<1x1x32xf32>
    tpu.vector_store %arg9[%c1_56, %c0_57, %c0_58], %92 {strides = array<i32>} : memref<2x1x32xf32, #tpu.memory_space<vmem>>, vector<1x1x32xf32>,
    return
  }
  func.func @transform_0(%arg0: i32) -> (i32, i32, i32) {
    %c0_i32 = arith.constant 0 : i32
    %c0_i32_0 = arith.constant 0 : i32
    %c0_i32_1 = arith.constant 0 : i32
    %c0_i32_2 = arith.constant 0 : i32
    return %c0_i32, %c0_i32_0, %c0_i32_1 : i32, i32, i32
  }
  func.func @transform_1(%arg0: i32) -> (i32, i32, i32) {
    %c0_i32 = arith.constant 0 : i32
    %c0_i32_0 = arith.constant 0 : i32
    %c0_i32_1 = arith.constant 0 : i32
    %c0_i32_2 = arith.constant 0 : i32
    return %c0_i32, %c0_i32_0, %c0_i32_1 : i32, i32, i32
  }
  func.func @transform_2(%arg0: i32) -> (i32, i32) {
    %c0_i32 = arith.constant 0 : i32
    %c0_i32_0 = arith.constant 0 : i32
    %c0_i32_1 = arith.constant 0 : i32
    return %c0_i32, %c0_i32_0 : i32, i32
  }
  func.func @transform_3(%arg0: i32) -> (i32, i32) {
    %c0_i32 = arith.constant 0 : i32
    %c0_i32_0 = arith.constant 0 : i32
    %c0_i32_1 = arith.constant 0 : i32
    return %c0_i32, %c0_i32_0 : i32, i32
  }
  func.func @transform_4(%arg0: i32) -> (i32, i32) {
    %c0_i32 = arith.constant 0 : i32
    %c0_i32_0 = arith.constant 0 : i32
    %c0_i32_1 = arith.constant 0 : i32
    return %c0_i32, %c0_i32_0 : i32, i32
  }
  func.func @transform_5(%arg0: i32) -> (i32, i32) {
    %c0_i32 = arith.constant 0 : i32
    %c0_i32_0 = arith.constant 0 : i32
    %c0_i32_1 = arith.constant 0 : i32
    return %c0_i32, %c0_i32_0 : i32, i32
  }
  func.func @transform_6(%arg0: i32) -> (i32, i32) {
    %c0_i32 = arith.constant 0 : i32
    %c0_i32_0 = arith.constant 0 : i32
    %c0_i32_1 = arith.constant 0 : i32
    return %c0_i32, %c0_i32_0 : i32, i32
  }
  func.func @transform_7(%arg0: i32) -> (i32, i32, i32) {
    %c0_i32 = arith.constant 0 : i32
    %c0_i32_0 = arith.constant 0 : i32
    %c0_i32_1 = arith.constant 0 : i32
    %c0_i32_2 = arith.constant 0 : i32
    return %c0_i32, %c0_i32_0, %c0_i32_1 : i32, i32, i32
  }
  func.func @transform_8(%arg0: i32) -> (i32, i32, i32) {
    %c0_i32 = arith.constant 0 : i32
    %c0_i32_0 = arith.constant 0 : i32
    %c0_i32_1 = arith.constant 0 : i32
    %c0_i32_2 = arith.constant 0 : i32
    return %c0_i32, %c0_i32_0, %c0_i32_1 : i32, i32, i32
  }
}

</mosaic_0001>

<llo_original>
// kernel: tpu_custom_call.1
$region0: #{tpu_custom_call.1}
  #allocation0 [shape = 'u32[]', space=smem, size = 0x4, offset = 0x4, fixed_abs, tag = 'smem constant byte address 0x4 - core index']
  #allocation1 [shape = 'u32[72,128]{1,0:T(1,128)}', space=vmem, size = 0x9000, scoped, tag = 'internal scratch']
  %s0 = inlined_call_operand.vmem [shape: f32[2,32,16], index: 0, kind: input, shape index: {}]
  %s1 = inlined_call_operand.vmem [shape: f32[2,8,32], index: 1, kind: input, shape index: {}]
  %s2 = inlined_call_operand.vmem [shape: f32[32,32], index: 2, kind: input, shape index: {}]
  %s3 = inlined_call_operand.vmem [shape: f32[16,32], index: 3, kind: input, shape index: {}]
  %s4 = inlined_call_operand.vmem [shape: f32[16,32], index: 4, kind: input, shape index: {}]
  %s5 = inlined_call_operand.vmem [shape: f32[1,16], index: 5, kind: input, shape index: {}]
  %s6 = inlined_call_operand.vmem [shape: f32[1,16], index: 6, kind: input, shape index: {}]
  %s7 = inlined_call_operand.hbm [shape: f32[2,1,32], index: 7, kind: output, shape index: {0}]
  %s8 = inlined_call_operand.hbm [shape: f32[2,1,32], index: 8, kind: output, shape index: {1}]
  %9 = xla_tuple %s7, %s8
  %s10 = sld [smem:[#allocation0]]
  $region46: #{tpu_custom_call.1} parent=0
    _
  %s12 = ssub.s32 1, %s10
  %s13 = scalar_select 0, %s12, %s10
  $region1: #{tpu_custom_call.1} parent=0
    #allocation2 [shape = 'u8[1024]{0}', space=vmem, size = 0x400, scoped, tag = 'output window, operand 0, single buffered']
    #allocation3 [shape = 's32[1]{0}', space=sflag, size = 0x4, scoped, tag = 'scoped memory for tpu_custom_call.1']
    #allocation4 [shape = 'u8[1024]{0}', space=vmem, size = 0x400, scoped, tag = 'output window, operand 1, single buffered']
    #allocation5 [shape = 's32[1]{0}', space=sflag, size = 0x4, scoped, tag = 'scoped memory for tpu_custom_call.1']
    %14 = vsyncpa [#allocation3], 0
    %15 = vsyncpa [#allocation5], 0
    // Predicated region
    $region2: #{tpu_custom_call.1} parent=1 // pred_check
      _
    $region3: #{tpu_custom_call.1} parent=1 // pred_check_branch
      %17 = sbr.rel (0) target = $region5
    $region4: #{tpu_custom_call.1} parent=1 // pred_region
      _
    $region5: #{tpu_custom_call.1} parent=1 // pred_fallthru
      _
    // Predicated region
    $region6: #{tpu_custom_call.1} parent=1 // pred_check
      _
    $region7: #{tpu_custom_call.1} parent=1 // pred_check_branch
      %19 = sbr.rel (0) target = $region9
    $region8: #{tpu_custom_call.1} parent=1 // pred_region
      _
    $region9: #{tpu_custom_call.1} parent=1 // pred_fallthru
      _
    // Predicated region
    $region10: #{tpu_custom_call.1} parent=1 // pred_check
      _
    $region11: #{tpu_custom_call.1} parent=1 // pred_check_branch
      %21 = sbr.rel (0) target = $region13
    $region12: #{tpu_custom_call.1} parent=1 // pred_region
      _
    $region13: #{tpu_custom_call.1} parent=1 // pred_fallthru
      _
    // Predicated region
    $region14: #{tpu_custom_call.1} parent=1 // pred_check
      _
    $region15: #{tpu_custom_call.1} parent=1 // pred_check_branch
      %23 = sbr.rel (0) target = $region17
    $region16: #{tpu_custom_call.1} parent=1 // pred_region
      _
    $region17: #{tpu_custom_call.1} parent=1 // pred_fallthru
      _
    // Predicated region
    $region18: #{tpu_custom_call.1} parent=1 // pred_check
      _
    $region19: #{tpu_custom_call.1} parent=1 // pred_check_branch
      %25 = sbr.rel (0) target = $region21
    $region20: #{tpu_custom_call.1} parent=1 // pred_region
      _
    $region21: #{tpu_custom_call.1} parent=1 // pred_fallthru
      _
    // Predicated region
    $region22: #{tpu_custom_call.1} parent=1 // pred_check
      _
    $region23: #{tpu_custom_call.1} parent=1 // pred_check_branch
      %27 = sbr.rel (0) target = $region25
    $region24: #{tpu_custom_call.1} parent=1 // pred_region
      _
    $region25: #{tpu_custom_call.1} parent=1 // pred_fallthru
      _
    // Predicated region
    $region26: #{tpu_custom_call.1} parent=1 // pred_check
      _
    $region27: #{tpu_custom_call.1} parent=1 // pred_check_branch
      %29 = sbr.rel (0) target = $region29
    $region28: #{tpu_custom_call.1} parent=1 // pred_region
      _
    $region29: #{tpu_custom_call.1} parent=1 // pred_fallthru
      _
    %v30 = vld [vmem:[%s2] sm:$0xff]
    %v31 = vld [vmem:[%s2 + $0x8] sm:$0xff]
    %v32 = vld [vmem:[%s2 + $0x10] sm:$0xff]
    %v33 = vld [vmem:[%s2 + $0x18] sm:$0xff]
    %v34 = vld [vmem:[%s3] sm:$0xff]
    %v35 = vld [vmem:[%s3 + $0x8] sm:$0xff]
    %v36 = vld [vmem:[%s4] sm:$0xff]
    %v37 = vld [vmem:[%s4 + $0x8] sm:$0xff]
    %v38 = vld [vmem:[%s5] sm:$0x1]
    %v39 = vld [vmem:[%s6] sm:$0x1]
    %v40 = vld [vmem:[%s0] sm:$0xff]
    %v41 = vld [vmem:[%s0 + $0x8] sm:$0xff]
    %v42 = vld [vmem:[%s0 + $0x10] sm:$0xff]
    %v43 = vld [vmem:[%s0 + $0x18] sm:$0xff]
    %v44 = vld [vmem:[%s1] sm:$0xff]
    %vm45 = vcmask 261120
    %v47 = vsel %vm45, %v44, 0
    %49 = vmatpush.msra.mxu0 0.0
    %50 = vmatpush.msra.mxu0 0.0
    %51 = vmatpush.msra.mxu0 0.0
    %52 = vmatpush.msra.mxu0 0.0
    %53 = vmatpush.msra.mxu0 0.0
    %54 = vmatpush.msra.mxu0 0.0
    %55 = vmatpush.msra.mxu0 0.0
    %56 = vmatpush.msra.mxu0 0.0
    %57 = vmatpush.msra.mxu0 0.0
    %58 = vmatpush.msra.mxu0 0.0
    %59 = vmatpush.msra.mxu0 0.0
    %60 = vmatpush.msra.mxu0 0.0
    %61 = vmatpush.msra.mxu0 %v33
    %62 = vmatpush.msra.mxu0 %v32
    %63 = vmatpush.msra.mxu0 %v31
    %64 = vmatpush.msra.mxu0 %v30
    %65 = vmatmul.f32.gmra.mxu0 %v47
    %v66 = vpop.f32.mrf.mxu0
    %v67 = vadd.f32 0.0, %v66
    %68 = vdwg.mxu0
    %v70 = vsel %vm45, %v67, 0
    %72 = vmatpush.msra.mxu0 0.0
    %73 = vmatpush.msra.mxu0 0.0
    %74 = vmatpush.msra.mxu0 0.0
    %75 = vmatpush.msra.mxu0 0.0
    %76 = vmatpush.msra.mxu0 0.0
    %77 = vmatpush.msra.mxu0 0.0
    %78 = vmatpush.msra.mxu0 0.0
    %79 = vmatpush.msra.mxu0 0.0
    %80 = vmatpush.msra.mxu0 0.0
    %81 = vmatpush.msra.mxu0 0.0
    %82 = vmatpush.msra.mxu0 0.0
    %83 = vmatpush.msra.mxu0 0.0
    %84 = vmatpush.msra.mxu0 %v43
    %85 = vmatpush.msra.mxu0 %v42
    %86 = vmatpush.msra.mxu0 %v41
    %87 = vmatpush.msra.mxu0 %v40
    %88 = vmatmul.f32.gmra.mxu0 %v70
    %v89 = vpop.f32.mrf.mxu0
    %v90 = vadd.f32 0.0, %v89
    %91 = vdwg.mxu0
    %v93 = vsel %vm45, %v34, 0
    %v96 = vsel %vm45, %v35, 0
    %98 = vmatpush.msra.mxu0 0.0
    %99 = vmatpush.msra.mxu0 0.0
    %100 = vmatpush.msra.mxu0 0.0
    %101 = vmatpush.msra.mxu0 0.0
    %102 = vmatpush.msra.mxu0 0.0
    %103 = vmatpush.msra.mxu0 0.0
    %104 = vmatpush.msra.mxu0 0.0
    %105 = vmatpush.msra.mxu0 0.0
    %106 = vmatpush.msra.mxu0 0.0
    %107 = vmatpush.msra.mxu0 0.0
    %108 = vmatpush.msra.mxu0 0.0
    %109 = vmatpush.msra.mxu0 0.0
    %110 = vmatpush.msra.mxu0 %v43
    %111 = vmatpush.msra.mxu0 %v42
    %112 = vmatpush.msra.mxu0 %v41
    %113 = vmatpush.msra.mxu0 %v40
    %114 = vmatmul.f32.gmra.mxu0 %v93
    %v115 = vpop.f32.mrf.mxu0
    %v116 = vadd.f32 0.0, %v115
    %117 = vmatmul.f32.gmra.mxu0 %v96
    %v118 = vpop.f32.mrf.mxu0
    %v119 = vadd.f32 0.0, %v118
    %120 = vdwg.mxu0
    %v122 = vsel %vm45, %v36, 0
    %v125 = vsel %vm45, %v37, 0
    %127 = vmatpush.xpose.msra.mxu0 0.0
    %128 = vmatpush.xpose.msra.mxu0 0.0
    %129 = vmatpush.xpose.msra.mxu0 0.0
    %130 = vmatpush.xpose.msra.mxu0 0.0
    %131 = vmatpush.xpose.msra.mxu0 0.0
    %132 = vmatpush.xpose.msra.mxu0 0.0
    %133 = vmatpush.xpose.msra.mxu0 0.0
    %134 = vmatpush.xpose.msra.mxu0 0.0
    %135 = vmatpush.xpose.msra.mxu0 0.0
    %136 = vmatpush.xpose.msra.mxu0 0.0
    %137 = vmatpush.xpose.msra.mxu0 0.0
    %138 = vmatpush.xpose.msra.mxu0 0.0
    %139 = vmatpush.xpose.msra.mxu0 0.0
    %140 = vmatpush.xpose.msra.mxu0 0.0
    %141 = vmatpush.xpose.msra.mxu0 0.0
    %142 = vmatpush.xpose.msra.mxu0 %v47
    %143 = vmatmul.f32.gmra.mxu0 %v122
    %v144 = vpop.f32.mrf.mxu0
    %v145 = vadd.f32 0.0, %v144
    %146 = vmatmul.f32.gmra.mxu0 %v125
    %v147 = vpop.f32.mrf.mxu0
    %v148 = vadd.f32 0.0, %v147
    %149 = vdwg.mxu0
    %vm150 = vcmask 64512
    %v152 = vsel %vm150, %v145, 0
    %v155 = vsel %vm150, %v148, 0
    %157 = vmatpush.msra.mxu0 0.0
    %158 = vmatpush.msra.mxu0 0.0
    %159 = vmatpush.msra.mxu0 0.0
    %160 = vmatpush.msra.mxu0 0.0
    %161 = vmatpush.msra.mxu0 0.0
    %162 = vmatpush.msra.mxu0 0.0
    %163 = vmatpush.msra.mxu0 0.0
    %164 = vmatpush.msra.mxu0 0.0
    %165 = vmatpush.msra.mxu0 0.0
    %166 = vmatpush.msra.mxu0 0.0
    %167 = vmatpush.msra.mxu0 0.0
    %168 = vmatpush.msra.mxu0 0.0
    %169 = vmatpush.msra.mxu0 0.0
    %170 = vmatpush.msra.mxu0 0.0
    %171 = vmatpush.msra.mxu0 0.0
    %172 = vmatpush.msra.mxu0 %v90
    %173 = vmatmul.f32.gmra.mxu0 %v152
    %v174 = vpop.f32.mrf.mxu0
    %v175 = vadd.f32 0.0, %v174
    %176 = vmatmul.f32.gmra.mxu0 %v155
    %v177 = vpop.f32.mrf.mxu0
    %v178 = vadd.f32 0.0, %v177
    %179 = vdwg.mxu0
    %v180 = vadd.f32 %v116, %v175
    %v181 = vadd.f32 %v119, %v178
    %v182 = vtanh.pop %v180
    %v183 = vtanh.pop %v181
    %vm184 = vcmask 130048
    %v186 = vsel %vm184, %v116, 0
    %v189 = vsel %vm184, %v119, 0
    %v192 = vsel %vm184, %v90, 0
    %194 = vmatpush.xpose.msra.mxu0 0.0
    %195 = vmatpush.xpose.msra.mxu0 0.0
    %196 = vmatpush.xpose.msra.mxu0 0.0
    %197 = vmatpush.xpose.msra.mxu0 0.0
    %198 = vmatpush.xpose.msra.mxu0 0.0
    %199 = vmatpush.xpose.msra.mxu0 0.0
    %200 = vmatpush.xpose.msra.mxu0 0.0
    %201 = vmatpush.xpose.msra.mxu0 0.0
    %202 = vmatpush.xpose.msra.mxu0 0.0
    %203 = vmatpush.xpose.msra.mxu0 0.0
    %204 = vmatpush.xpose.msra.mxu0 0.0
    %205 = vmatpush.xpose.msra.mxu0 0.0
    %206 = vmatpush.xpose.msra.mxu0 0.0
    %207 = vmatpush.xpose.msra.mxu0 0.0
    %208 = vmatpush.xpose.msra.mxu0 0.0
    %209 = vmatpush.xpose.msra.mxu0 %v192
    %210 = vmatmul.f32.gmra.mxu0 %v186
    %v211 = vpop.f32.mrf.mxu0
    %v212 = vadd.f32 0.0, %v211
    %213 = vmatmul.f32.gmra.mxu0 %v189
    %v214 = vpop.f32.mrf.mxu0
    %v215 = vadd.f32 0.0, %v214
    %216 = vdwg.mxu0
    %v217 = vadd.f32 %v145, %v212
    %v218 = vadd.f32 %v148, %v215
    %v219 = vtanh.pop %v217
    %v220 = vtanh.pop %v218
    %v222 = vsel %vm184, %v38, 0
    %224 = vmatpush.msra.mxu0 0.0
    %225 = vmatpush.msra.mxu0 0.0
    %226 = vmatpush.msra.mxu0 0.0
    %227 = vmatpush.msra.mxu0 0.0
    %228 = vmatpush.msra.mxu0 0.0
    %229 = vmatpush.msra.mxu0 0.0
    %230 = vmatpush.msra.mxu0 0.0
    %231 = vmatpush.msra.mxu0 0.0
    %232 = vmatpush.msra.mxu0 0.0
    %233 = vmatpush.msra.mxu0 0.0
    %234 = vmatpush.msra.mxu0 0.0
    %235 = vmatpush.msra.mxu0 0.0
    %236 = vmatpush.msra.mxu0 0.0
    %237 = vmatpush.msra.mxu0 0.0
    %238 = vmatpush.msra.mxu0 %v183
    %239 = vmatpush.msra.mxu0 %v182
    %240 = vmatmul.f32.gmra.mxu0 %v222
    %v241 = vpop.f32.mrf.mxu0
    %v242 = vadd.f32 0.0, %v241
    %243 = vdwg.mxu0
    %v245 = vsel %vm184, %v39, 0
    %247 = vmatpush.msra.mxu0 0.0
    %248 = vmatpush.msra.mxu0 0.0
    %249 = vmatpush.msra.mxu0 0.0
    %250 = vmatpush.msra.mxu0 0.0
    %251 = vmatpush.msra.mxu0 0.0
    %252 = vmatpush.msra.mxu0 0.0
    %253 = vmatpush.msra.mxu0 0.0
    %254 = vmatpush.msra.mxu0 0.0
    %255 = vmatpush.msra.mxu0 0.0
    %256 = vmatpush.msra.mxu0 0.0
    %257 = vmatpush.msra.mxu0 0.0
    %258 = vmatpush.msra.mxu0 0.0
    %259 = vmatpush.msra.mxu0 0.0
    %260 = vmatpush.msra.mxu0 0.0
    %261 = vmatpush.msra.mxu0 %v220
    %262 = vmatpush.msra.mxu0 %v219
    %263 = vmatmul.f32.gmra.mxu0 %v245
    %v264 = vpop.f32.mrf.mxu0
    %v265 = vadd.f32 0.0, %v264
    %266 = vdwg.mxu0
    %vm267 = vcmask 122880
    %v268 = vsel %vm267, %v242, -inf
    %269 = vmax.xlane.f32.xlu0 %v268
    %v270 = vpop.xlane.xlu0 %269
    %v271 = vsub.f32 %v242, %v270
    %v272 = vmul.f32 %v271, 1.442695
    %v273 = vpow.pop %v272
    %v274 = vsel %vm267, %v273, 0.0
    %275 = vadd.xlane.f32.xlu0 %v274
    %v276 = vpop.xlane.xlu0 %275
    %v277 = vrcp.pop %v276
    %v278 = vmul.f32 %v273, %v277
    %vm279 = vcmask 57344
    %v280 = vsel %vm279, %v265, -inf
    %281 = vmax.xlane.f32.xlu0 %v280
    %v282 = vpop.xlane.xlu0 %281
    %v283 = vsub.f32 %v265, %v282
    %v284 = vmul.f32 %v283, 1.442695
    %v285 = vpow.pop %v284
    %v286 = vsel %vm279, %v285, 0.0
    %287 = vadd.xlane.f32.xlu0 %v286
    %v288 = vpop.xlane.xlu0 %287
    %v289 = vrcp.pop %v288
    %v290 = vmul.f32 %v285, %v289
    %v292 = vsel %vm184, %v278, 0
    %v295 = vsel %vm184, %v40, 0
    %v298 = vsel %vm184, %v41, 0
    %v301 = vsel %vm184, %v42, 0
    %v304 = vsel %vm184, %v43, 0
    %306 = vmatpush.xpose.msra.mxu0 0.0
    %307 = vmatpush.xpose.msra.mxu0 0.0
    %308 = vmatpush.xpose.msra.mxu0 0.0
    %309 = vmatpush.xpose.msra.mxu0 0.0
    %310 = vmatpush.xpose.msra.mxu0 0.0
    %311 = vmatpush.xpose.msra.mxu0 0.0
    %312 = vmatpush.xpose.msra.mxu0 0.0
    %313 = vmatpush.xpose.msra.mxu0 0.0
    %314 = vmatpush.xpose.msra.mxu0 0.0
    %315 = vmatpush.xpose.msra.mxu0 0.0
    %316 = vmatpush.xpose.msra.mxu0 0.0
    %317 = vmatpush.xpose.msra.mxu0 0.0
    %318 = vmatpush.xpose.msra.mxu0 %v304
    %319 = vmatpush.xpose.msra.mxu0 %v301
    %320 = vmatpush.xpose.msra.mxu0 %v298
    %321 = vmatpush.xpose.msra.mxu0 %v295
    %322 = vmatmul.f32.gmra.mxu0 %v292
    %v323 = vpop.f32.mrf.mxu0
    %v324 = vadd.f32 0.0, %v323
    %325 = vdwg.mxu0
    %v327 = vsel %vm150, %v290, 0
    %329 = vmatpush.msra.mxu0 0.0
    %330 = vmatpush.msra.mxu0 0.0
    %331 = vmatpush.msra.mxu0 0.0
    %332 = vmatpush.msra.mxu0 0.0
    %333 = vmatpush.msra.mxu0 0.0
    %334 = vmatpush.msra.mxu0 0.0
    %335 = vmatpush.msra.mxu0 0.0
    %336 = vmatpush.msra.mxu0 0.0
    %337 = vmatpush.msra.mxu0 0.0
    %338 = vmatpush.msra.mxu0 0.0
    %339 = vmatpush.msra.mxu0 0.0
    %340 = vmatpush.msra.mxu0 0.0
    %341 = vmatpush.msra.mxu0 0.0
    %342 = vmatpush.msra.mxu0 0.0
    %343 = vmatpush.msra.mxu0 0.0
    %344 = vmatpush.msra.mxu0 %v44
    %345 = vmatmul.f32.gmra.mxu0 %v327
    %v346 = vpop.f32.mrf.mxu0
    %v347 = vadd.f32 0.0, %v346
    %348 = vdwg.mxu0
    %vm349 = vcmask 253952
    %350 = vst.msk [vmem:[#allocation2] sm:$0x1] %vm349, %v324
    %351 = vst.msk [vmem:[#allocation4] sm:$0x1] %vm349, %v347
    %s352 = scalar_lea.vmem %s0, 32
    %v353 = vld [vmem:[%s352] sm:$0xff]
    %v354 = vld [vmem:[%s352 + $0x8] sm:$0xff]
    %v355 = vld [vmem:[%s352 + $0x10] sm:$0xff]
    %v356 = vld [vmem:[%s352 + $0x18] sm:$0xff]
    %s357 = scalar_lea.vmem %s1, 8
    %v358 = vld [vmem:[%s357] sm:$0xff]
    %v360 = vsel %vm45, %v358, 0
    %362 = vmatpush.msra.mxu0 0.0
    %363 = vmatpush.msra.mxu0 0.0
    %364 = vmatpush.msra.mxu0 0.0
    %365 = vmatpush.msra.mxu0 0.0
    %366 = vmatpush.msra.mxu0 0.0
    %367 = vmatpush.msra.mxu0 0.0
    %368 = vmatpush.msra.mxu0 0.0
    %369 = vmatpush.msra.mxu0 0.0
    %370 = vmatpush.msra.mxu0 0.0
    %371 = vmatpush.msra.mxu0 0.0
    %372 = vmatpush.msra.mxu0 0.0
    %373 = vmatpush.msra.mxu0 0.0
    %374 = vmatpush.msra.mxu0 %v33
    %375 = vmatpush.msra.mxu0 %v32
    %376 = vmatpush.msra.mxu0 %v31
    %377 = vmatpush.msra.mxu0 %v30
    %378 = vmatmul.f32.gmra.mxu0 %v360
    %v379 = vpop.f32.mrf.mxu0
    %v380 = vadd.f32 0.0, %v379
    %381 = vdwg.mxu0
    %v383 = vsel %vm45, %v380, 0
    %385 = vmatpush.msra.mxu0 0.0
    %386 = vmatpush.msra.mxu0 0.0
    %387 = vmatpush.msra.mxu0 0.0
    %388 = vmatpush.msra.mxu0 0.0
    %389 = vmatpush.msra.mxu0 0.0
    %390 = vmatpush.msra.mxu0 0.0
    %391 = vmatpush.msra.mxu0 0.0
    %392 = vmatpush.msra.mxu0 0.0
    %393 = vmatpush.msra.mxu0 0.0
    %394 = vmatpush.msra.mxu0 0.0
    %395 = vmatpush.msra.mxu0 0.0
    %396 = vmatpush.msra.mxu0 0.0
    %397 = vmatpush.msra.mxu0 %v356
    %398 = vmatpush.msra.mxu0 %v355
    %399 = vmatpush.msra.mxu0 %v354
    %400 = vmatpush.msra.mxu0 %v353
    %401 = vmatmul.f32.gmra.mxu0 %v383
    %v402 = vpop.f32.mrf.mxu0
    %v403 = vadd.f32 0.0, %v402
    %404 = vdwg.mxu0
    %405 = vmatpush.msra.mxu0 0.0
    %406 = vmatpush.msra.mxu0 0.0
    %407 = vmatpush.msra.mxu0 0.0
    %408 = vmatpush.msra.mxu0 0.0
    %409 = vmatpush.msra.mxu0 0.0
    %410 = vmatpush.msra.mxu0 0.0
    %411 = vmatpush.msra.mxu0 0.0
    %412 = vmatpush.msra.mxu0 0.0
    %413 = vmatpush.msra.mxu0 0.0
    %414 = vmatpush.msra.mxu0 0.0
    %415 = vmatpush.msra.mxu0 0.0
    %416 = vmatpush.msra.mxu0 0.0
    %417 = vmatpush.msra.mxu0 %v356
    %418 = vmatpush.msra.mxu0 %v355
    %419 = vmatpush.msra.mxu0 %v354
    %420 = vmatpush.msra.mxu0 %v353
    %421 = vmatmul.f32.gmra.mxu0 %v93
    %v422 = vpop.f32.mrf.mxu0
    %v423 = vadd.f32 0.0, %v422
    %424 = vmatmul.f32.gmra.mxu0 %v96
    %v425 = vpop.f32.mrf.mxu0
    %v426 = vadd.f32 0.0, %v425
    %427 = vdwg.mxu0
    %428 = vmatpush.xpose.msra.mxu0 0.0
    %429 = vmatpush.xpose.msra.mxu0 0.0
    %430 = vmatpush.xpose.msra.mxu0 0.0
    %431 = vmatpush.xpose.msra.mxu0 0.0
    %432 = vmatpush.xpose.msra.mxu0 0.0
    %433 = vmatpush.xpose.msra.mxu0 0.0
    %434 = vmatpush.xpose.msra.mxu0 0.0
    %435 = vmatpush.xpose.msra.mxu0 0.0
    %436 = vmatpush.xpose.msra.mxu0 0.0
    %437 = vmatpush.xpose.msra.mxu0 0.0
    %438 = vmatpush.xpose.msra.mxu0 0.0
    %439 = vmatpush.xpose.msra.mxu0 0.0
    %440 = vmatpush.xpose.msra.mxu0 0.0
    %441 = vmatpush.xpose.msra.mxu0 0.0
    %442 = vmatpush.xpose.msra.mxu0 0.0
    %443 = vmatpush.xpose.msra.mxu0 %v360
    %444 = vmatmul.f32.gmra.mxu0 %v122
    %v445 = vpop.f32.mrf.mxu0
    %v446 = vadd.f32 0.0, %v445
    %447 = vmatmul.f32.gmra.mxu0 %v125
    %v448 = vpop.f32.mrf.mxu0
    %v449 = vadd.f32 0.0, %v448
    %450 = vdwg.mxu0
    %v452 = vsel %vm150, %v446, 0
    %v455 = vsel %vm150, %v449, 0
    %457 = vmatpush.msra.mxu0 0.0
    %458 = vmatpush.msra.mxu0 0.0
    %459 = vmatpush.msra.mxu0 0.0
    %460 = vmatpush.msra.mxu0 0.0
    %461 = vmatpush.msra.mxu0 0.0
    %462 = vmatpush.msra.mxu0 0.0
    %463 = vmatpush.msra.mxu0 0.0
    %464 = vmatpush.msra.mxu0 0.0
    %465 = vmatpush.msra.mxu0 0.0
    %466 = vmatpush.msra.mxu0 0.0
    %467 = vmatpush.msra.mxu0 0.0
    %468 = vmatpush.msra.mxu0 0.0
    %469 = vmatpush.msra.mxu0 0.0
    %470 = vmatpush.msra.mxu0 0.0
    %471 = vmatpush.msra.mxu0 0.0
    %472 = vmatpush.msra.mxu0 %v403
    %473 = vmatmul.f32.gmra.mxu0 %v452
    %v474 = vpop.f32.mrf.mxu0
    %v475 = vadd.f32 0.0, %v474
    %476 = vmatmul.f32.gmra.mxu0 %v455
    %v477 = vpop.f32.mrf.mxu0
    %v478 = vadd.f32 0.0, %v477
    %479 = vdwg.mxu0
    %v480 = vadd.f32 %v423, %v475
    %v481 = vadd.f32 %v426, %v478
    %v482 = vtanh.pop %v480
    %v483 = vtanh.pop %v481
    %v485 = vsel %vm184, %v423, 0
    %v488 = vsel %vm184, %v426, 0
    %v491 = vsel %vm184, %v403, 0
    %493 = vmatpush.xpose.msra.mxu0 0.0
    %494 = vmatpush.xpose.msra.mxu0 0.0
    %495 = vmatpush.xpose.msra.mxu0 0.0
    %496 = vmatpush.xpose.msra.mxu0 0.0
    %497 = vmatpush.xpose.msra.mxu0 0.0
    %498 = vmatpush.xpose.msra.mxu0 0.0
    %499 = vmatpush.xpose.msra.mxu0 0.0
    %500 = vmatpush.xpose.msra.mxu0 0.0
    %501 = vmatpush.xpose.msra.mxu0 0.0
    %502 = vmatpush.xpose.msra.mxu0 0.0
    %503 = vmatpush.xpose.msra.mxu0 0.0
    %504 = vmatpush.xpose.msra.mxu0 0.0
    %505 = vmatpush.xpose.msra.mxu0 0.0
    %506 = vmatpush.xpose.msra.mxu0 0.0
    %507 = vmatpush.xpose.msra.mxu0 0.0
    %508 = vmatpush.xpose.msra.mxu0 %v491
    %509 = vmatmul.f32.gmra.mxu0 %v485
    %v510 = vpop.f32.mrf.mxu0
    %v511 = vadd.f32 0.0, %v510
    %512 = vmatmul.f32.gmra.mxu0 %v488
    %v513 = vpop.f32.mrf.mxu0
    %v514 = vadd.f32 0.0, %v513
    %515 = vdwg.mxu0
    %v516 = vadd.f32 %v446, %v511
    %v517 = vadd.f32 %v449, %v514
    %v518 = vtanh.pop %v516
    %v519 = vtanh.pop %v517
    %520 = vmatpush.msra.mxu0 0.0
    %521 = vmatpush.msra.mxu0 0.0
    %522 = vmatpush.msra.mxu0 0.0
    %523 = vmatpush.msra.mxu0 0.0
    %524 = vmatpush.msra.mxu0 0.0
    %525 = vmatpush.msra.mxu0 0.0
    %526 = vmatpush.msra.mxu0 0.0
    %527 = vmatpush.msra.mxu0 0.0
    %528 = vmatpush.msra.mxu0 0.0
    %529 = vmatpush.msra.mxu0 0.0
    %530 = vmatpush.msra.mxu0 0.0
    %531 = vmatpush.msra.mxu0 0.0
    %532 = vmatpush.msra.mxu0 0.0
    %533 = vmatpush.msra.mxu0 0.0
    %534 = vmatpush.msra.mxu0 %v483
    %535 = vmatpush.msra.mxu0 %v482
    %536 = vmatmul.f32.gmra.mxu0 %v222
    %v537 = vpop.f32.mrf.mxu0
    %v538 = vadd.f32 0.0, %v537
    %539 = vdwg.mxu0
    %540 = vmatpush.msra.mxu0 0.0
    %541 = vmatpush.msra.mxu0 0.0
    %542 = vmatpush.msra.mxu0 0.0
    %543 = vmatpush.msra.mxu0 0.0
    %544 = vmatpush.msra.mxu0 0.0
    %545 = vmatpush.msra.mxu0 0.0
    %546 = vmatpush.msra.mxu0 0.0
    %547 = vmatpush.msra.mxu0 0.0
    %548 = vmatpush.msra.mxu0 0.0
    %549 = vmatpush.msra.mxu0 0.0
    %550 = vmatpush.msra.mxu0 0.0
    %551 = vmatpush.msra.mxu0 0.0
    %552 = vmatpush.msra.mxu0 0.0
    %553 = vmatpush.msra.mxu0 0.0
    %554 = vmatpush.msra.mxu0 %v519
    %555 = vmatpush.msra.mxu0 %v518
    %556 = vmatmul.f32.gmra.mxu0 %v245
    %v557 = vpop.f32.mrf.mxu0
    %v558 = vadd.f32 0.0, %v557
    %559 = vdwg.mxu0
    %v560 = vsel %vm267, %v538, -inf
    %561 = vmax.xlane.f32.xlu0 %v560
    %v562 = vpop.xlane.xlu0 %561
    %v563 = vsub.f32 %v538, %v562
    %v564 = vmul.f32 %v563, 1.442695
    %v565 = vpow.pop %v564
    %v566 = vsel %vm267, %v565, 0.0
    %567 = vadd.xlane.f32.xlu0 %v566
    %v568 = vpop.xlane.xlu0 %567
    %v569 = vrcp.pop %v568
    %v570 = vmul.f32 %v565, %v569
    %v571 = vsel %vm279, %v558, -inf
    %572 = vmax.xlane.f32.xlu0 %v571
    %v573 = vpop.xlane.xlu0 %572
    %v574 = vsub.f32 %v558, %v573
    %v575 = vmul.f32 %v574, 1.442695
    %v576 = vpow.pop %v575
    %v577 = vsel %vm279, %v576, 0.0
    %578 = vadd.xlane.f32.xlu0 %v577
    %v579 = vpop.xlane.xlu0 %578
    %v580 = vrcp.pop %v579
    %v581 = vmul.f32 %v576, %v580
    %v583 = vsel %vm184, %v570, 0
    %v586 = vsel %vm184, %v353, 0
    %v589 = vsel %vm184, %v354, 0
    %v592 = vsel %vm184, %v355, 0
    %v595 = vsel %vm184, %v356, 0
    %597 = vmatpush.xpose.msra.mxu0 0.0
    %598 = vmatpush.xpose.msra.mxu0 0.0
    %599 = vmatpush.xpose.msra.mxu0 0.0
    %600 = vmatpush.xpose.msra.mxu0 0.0
    %601 = vmatpush.xpose.msra.mxu0 0.0
    %602 = vmatpush.xpose.msra.mxu0 0.0
    %603 = vmatpush.xpose.msra.mxu0 0.0
    %604 = vmatpush.xpose.msra.mxu0 0.0
    %605 = vmatpush.xpose.msra.mxu0 0.0
    %606 = vmatpush.xpose.msra.mxu0 0.0
    %607 = vmatpush.xpose.msra.mxu0 0.0
    %608 = vmatpush.xpose.msra.mxu0 0.0
    %609 = vmatpush.xpose.msra.mxu0 %v595
    %610 = vmatpush.xpose.msra.mxu0 %v592
    %611 = vmatpush.xpose.msra.mxu0 %v589
    %612 = vmatpush.xpose.msra.mxu0 %v586
    %613 = vmatmul.f32.gmra.mxu0 %v583
    %v614 = vpop.f32.mrf.mxu0
    %v615 = vadd.f32 0.0, %v614
    %616 = vdwg.mxu0
    %v618 = vsel %vm150, %v581, 0
    %620 = vmatpush.msra.mxu0 0.0
    %621 = vmatpush.msra.mxu0 0.0
    %622 = vmatpush.msra.mxu0 0.0
    %623 = vmatpush.msra.mxu0 0.0
    %624 = vmatpush.msra.mxu0 0.0
    %625 = vmatpush.msra.mxu0 0.0
    %626 = vmatpush.msra.mxu0 0.0
    %627 = vmatpush.msra.mxu0 0.0
    %628 = vmatpush.msra.mxu0 0.0
    %629 = vmatpush.msra.mxu0 0.0
    %630 = vmatpush.msra.mxu0 0.0
    %631 = vmatpush.msra.mxu0 0.0
    %632 = vmatpush.msra.mxu0 0.0
    %633 = vmatpush.msra.mxu0 0.0
    %634 = vmatpush.msra.mxu0 0.0
    %635 = vmatpush.msra.mxu0 %v358
    %636 = vmatmul.f32.gmra.mxu0 %v618
    %v637 = vpop.f32.mrf.mxu0
    %v638 = vadd.f32 0.0, %v637
    %639 = vdwg.mxu0
    %s640 = scalar_lea.vmem [#allocation2], 1
    %641 = vst.msk [vmem:[%s640] sm:$0x1] %vm349, %v615
    %s642 = scalar_lea.vmem [#allocation4], 1
    %643 = vst.msk [vmem:[%s642] sm:$0x1] %vm349, %v638
    // Predicated region
    $region30: #{tpu_custom_call.1} parent=1 // pred_check
      _
    $region31: #{tpu_custom_call.1} parent=1 // pred_check_branch
      %645 = sbr.rel (0) target = $region33
    $region32: #{tpu_custom_call.1} parent=1 // pred_region
      %647 = vsyncadd [#allocation3], 0
      %s648 = sshll.u32 [#allocation2], 4
      %s649 = int_to_ptr.vmem [resolvable:$true] %s648
      %s650 = sshll.u32 %s7, 4
      %s651 = int_to_ptr.hbm [resolvable:$true] %s650
      %656 = dma.vmem_to_hbm [thread:$0]  %s649, 32, %s651, [#allocation3], 16, 16, 1
    $region33: #{tpu_custom_call.1} parent=1 // pred_fallthru
      _
    // Predicated region
    $region34: #{tpu_custom_call.1} parent=1 // pred_check
      _
    $region35: #{tpu_custom_call.1} parent=1 // pred_check_branch
      %658 = sbr.rel (0) target = $region37
    $region36: #{tpu_custom_call.1} parent=1 // pred_region
      %660 = vsyncadd [#allocation5], 0
      %s661 = sshll.u32 [#allocation4], 4
      %s662 = int_to_ptr.vmem [resolvable:$true] %s661
      %s663 = sshll.u32 %s8, 4
      %s664 = int_to_ptr.hbm [resolvable:$true] %s663
      %669 = dma.vmem_to_hbm [thread:$0]  %s662, 32, %s664, [#allocation5], 16, 16, 1
    $region37: #{tpu_custom_call.1} parent=1 // pred_fallthru
      _
    // Predicated region
    $region38: #{tpu_custom_call.1} parent=1 // pred_check
      _
    $region39: #{tpu_custom_call.1} parent=1 // pred_check_branch
      %671 = sbr.rel (0) target = $region41
    $region40: #{tpu_custom_call.1} parent=1 // pred_region
      %673 = dma.done [#allocation3], 32
    $region41: #{tpu_custom_call.1} parent=1 // pred_fallthru
      _
    // Predicated region
    $region42: #{tpu_custom_call.1} parent=1 // pred_check
      _
    $region43: #{tpu_custom_call.1} parent=1 // pred_check_branch
      %675 = sbr.rel (0) target = $region45
    $region44: #{tpu_custom_call.1} parent=1 // pred_region
      %677 = dma.done [#allocation5], 32
    $region45: #{tpu_custom_call.1} parent=1 // pred_fallthru
      _
    %678 = vsyncpa [#allocation3], 1
    %679 = vsyncpa [#allocation5], 1

</llo_original>
